<compile_context>
chip_gen: v7x
topology: tpu7x:2x2x1
jax: 0.10.0
libtpu: 0.0.40
codegen_flags: <defaults>
</compile_context>

<pallas_src>
import jax
import jax.numpy as jnp
import numpy as np
from jax.experimental import pallas as pl
from jax.experimental.pallas import tpu as pltpu

EPS = 1e-5  # nn.InstanceNorm2d default eps


def _fused_kernel(xpad_ref, w_ref, wf_ref, bf_ref, out_ref):
    # xpad_ref: (bb, Ho+1, Wo+1, 1)   once-padded input plane
    # w_ref:    (4, 64)               conv weight, tap-major (kh*2+kw, out_channel)
    # wf_ref:   (K, Hp, 2*Wp-1, 64)   fc weight, channels-last, zeros at odd columns
    # bf_ref:   (1, K, 1, 1)          fc bias
    # out_ref:  (bb, K, 1, 1)
    bb, hp2, wp2, _ = xpad_ref.shape
    ho, wo = hp2 - 1, wp2 - 1
    hp = ho // 2
    c = w_ref.shape[1]

    xp = xpad_ref[...]                                  # (bb, Ho+1, Wo+1, 1)
    w = w_ref[...]                                      # (4, 64)

    # ---- Conv2d(1->64, k=2, p=1) as 4 VPU broadcast FMAs on a channels-last tile ----
    # Conv bias omitted on purpose: InstanceNorm2d (affine=False) subtracts the
    # per-(sample, channel) mean, so the bias cancels exactly.
    conv = (xp[:, 0:ho, 0:wo, :]         * w[0:1, :]
            + xp[:, 0:ho, 1:wo + 1, :]   * w[1:2, :]
            + xp[:, 1:ho + 1, 0:wo, :]   * w[2:3, :]
            + xp[:, 1:ho + 1, 1:wo + 1, :] * w[3:4, :])   # (bb, Ho, Wo, 64) f32

    # ---- InstanceNorm2d(64): per-(b, c) stats over all Ho*Wo positions, biased var ----
    inv_n = 1.0 / (ho * wo)
    s = jnp.sum(jnp.sum(conv, axis=2, keepdims=True), axis=1, keepdims=True)
    mean = s * inv_n                                    # (bb, 1, 1, 64)
    cen = conv - mean
    v = jnp.sum(jnp.sum(cen * cen, axis=2, keepdims=True), axis=1, keepdims=True)
    act = jnp.maximum(cen * jax.lax.rsqrt(v * inv_n + EPS), 0.0)   # IN + ReLU

    # TODO(synk): Dropout(0.3) is identity in eval/inference mode, so it is not applied.

    # ---- MaxPool2d(2, 2) ----
    # rows (major dim): split into pairs and reduce.
    arow = jnp.max(act.reshape(bb, hp, 2, wo, c), axis=2)            # (bb, Hp, Wo, 64)
    # cols (sublane dim): pairwise max of neighbouring columns; only EVEN columns are
    # valid 2x2 pool outputs -- the fc weight is zero at odd columns, so no strided
    # selection is needed.
    mcol = jnp.maximum(arow[:, :, 0:wo - 1, :], arow[:, :, 1:wo, :])  # (bb, Hp, Wo-1, 64)

    # Attention branch elided: Softmax(dim=1) over a single logit is exactly 1.0, so
    # the weighted features equal the features bit-for-bit; only the fc matters.

    # ---- fc over all classes at once: broadcast multiply + staged reductions ----
    # TODO(synk): for large num_classes this should become an MXU contraction instead.
    prod = mcol[:, None, :, :, :] * wf_ref[...][None, :, :, :, :]    # (bb, K, Hp, Wo-1, 64)
    r = jnp.sum(prod, axis=-1, keepdims=True)        # lane reduce    (bb, K, Hp, Wo-1, 1)
    r = jnp.sum(r, axis=3, keepdims=True)            # sublane reduce (bb, K, Hp, 1, 1)
    r = jnp.sum(r, axis=2)                           # major reduce   (bb, K, 1, 1)
    out_ref[...] = r + bf_ref[...]


@jax.jit
def cnn2datt_forward(x, params):
    B, cin, H, W = x.shape
    assert cin == 1
    Ho, Wo = H + 1, W + 1                 # Conv2d k=2, padding=1, stride=1
    assert Ho % 2 == 0 and Wo % 2 == 0, "demo assumes even conv output (odd H, W)"
    Hp, Wp = Ho // 2, Wo // 2
    num_classes = params["fc_w"].shape[0]

    # ---- host prep: ONE pad/reshape of the activations; the rest is weight-only ----
    # Trailing singleton channel dim so the in-kernel tap slices broadcast lane-dense
    # against the (1, 64) conv-weight rows.
    xpad = jnp.pad(x, ((0, 0), (0, 0), (1, 1), (1, 1))).reshape(B, Ho + 1, Wo + 1, 1)
    xpad = xpad.astype(jnp.float32)

    w4 = params["conv_w"].reshape(64, 4).T.astype(jnp.float32)       # (4, 64) tap-major

    # fc weight: fc_w[k, c*Hp*Wp + ip*Wp + jp] -> (K, Hp, 2*Wp-1, 64) channels-last with
    # zeros interleaved at odd columns (the kernel's pairwise column max is only a valid
    # pool output at even columns).
    wf = params["fc_w"].reshape(num_classes, 64, Hp, Wp).transpose(0, 2, 3, 1)
    wfz = jnp.zeros((num_classes, Hp, 2 * Wp - 1, 64), jnp.float32)
    wfz = wfz.at[:, :, 0::2, :].set(wf.astype(jnp.float32))
    bf = params["fc_b"].reshape(1, num_classes, 1, 1).astype(jnp.float32)

    bb = B                                # whole batch in one invocation (B is tiny)
    assert B % bb == 0
    # TODO(synk): for large B, shrink bb (multiple of 8) so the grid tiles the batch and
    # mark the axis core-parallel on v7x; re-budget VMEM against 64 MiB there.
    out4 = pl.pallas_call(
        _fused_kernel,
        out_shape=jax.ShapeDtypeStruct((B, num_classes, 1, 1), jnp.float32),
        grid_spec=pltpu.PrefetchScalarGridSpec(
            num_scalar_prefetch=0,
            grid=(B // bb,),
            in_specs=[
                pl.BlockSpec((bb, Ho + 1, Wo + 1, 1), lambda b: (b, 0, 0, 0)),
                pl.BlockSpec((4, 64), lambda b: (0, 0)),
                pl.BlockSpec((num_classes, Hp, 2 * Wp - 1, 64), lambda b: (0, 0, 0, 0)),
                pl.BlockSpec((1, num_classes, 1, 1), lambda b: (0, 0, 0, 0)),
            ],
            out_specs=pl.BlockSpec((bb, num_classes, 1, 1), lambda b: (b, 0, 0, 0)),
        ),
        compiler_params=pltpu.CompilerParams(
            dimension_semantics=("parallel",),     # independent batch blocks
            vmem_limit_bytes=32 * 1024 * 1024,
        ),
    )(xpad, w4, wfz, bf)
    return out4.reshape(B, num_classes)


def init_params(key, feat_size, num_classes=1):
    ks = jax.random.split(key, 8)

    def u(k, shape, fan_in):
        bound = 1.0 / np.sqrt(fan_in)
        return jax.random.uniform(k, shape, jnp.float32, -bound, bound)

    return {
        "conv_w": u(ks[0], (64, 1, 2, 2), 4),
        "conv_b": u(ks[1], (64,), 4),
        "attn_w1": u(ks[2], (128, feat_size), feat_size),
        "attn_b1": u(ks[3], (128,), feat_size),
        "attn_w2": u(ks[4], (1, 128), 128),
        "attn_b2": u(ks[5], (1,), 128),
        "fc_w": u(ks[6], (num_classes, feat_size), feat_size),
        "fc_b": u(ks[7], (num_classes,), feat_size),
    }


def reference_forward(x, params):
    # pure-JAX reference mirroring the PyTorch forward (eval mode), attention included.
    HI = jax.lax.Precision.HIGHEST
    B = x.shape[0]
    xpad = jnp.pad(x, ((0, 0), (0, 0), (1, 1), (1, 1)))
    conv = jax.lax.conv_general_dilated(
        xpad, params["conv_w"], (1, 1), "VALID",
        dimension_numbers=("NCHW", "OIHW", "NCHW"), precision=HI)
    conv = conv + params["conv_b"][None, :, None, None]
    mean = conv.mean(axis=(2, 3), keepdims=True)
    var = conv.var(axis=(2, 3), keepdims=True)
    act = jnp.maximum((conv - mean) / jnp.sqrt(var + EPS), 0.0)
    Ho, Wo = act.shape[2], act.shape[3]
    pooled = act.reshape(B, 64, Ho // 2, 2, Wo // 2, 2).max(axis=(3, 5))
    feat = pooled.reshape(B, -1)
    h = jnp.tanh(jnp.matmul(feat, params["attn_w1"].T, precision=HI) + params["attn_b1"])
    logit = jnp.matmul(h, params["attn_w2"].T, precision=HI) + params["attn_b2"]
    attn = jax.nn.softmax(logit, axis=1)
    return jnp.matmul(feat * attn, params["fc_w"].T, precision=HI) + params["fc_b"]


if __name__ == "__main__":
    B, H, W = 2, 7, 7                                    # input_size = (1, 7, 7)
    feat_size = 64 * ((H + 1) // 2) * ((W + 1) // 2)     # cnn_out_size = 1024
    key = jax.random.PRNGKey(0)
    kx, kp = jax.random.split(key)
    x = jax.random.normal(kx, (B, 1, H, W), jnp.float32)
    params = init_params(kp, feat_size, num_classes=1)

    out = jax.block_until_ready(cnn2datt_forward(x, params))
    ref = jax.block_until_ready(reference_forward(x, params))
    np.testing.assert_allclose(np.asarray(out), np.asarray(ref), rtol=1e-3, atol=1e-3)
    assert out.shape == (B, 1)
    print("KERNEL_OK")
</pallas_src>

<mosaic_0001>
module attributes {stable_mosaic.version = 11 : i64} {
  func.func @_fused_kernel(%arg0: i32, %arg1: memref<2x9x9x1xf32, #tpu.memory_space<vmem>>, %arg2: memref<4x64xf32, #tpu.memory_space<vmem>>, %arg3: memref<1x4x7x64xf32, #tpu.memory_space<vmem>>, %arg4: memref<1x1x1x1xf32, #tpu.memory_space<vmem>>, %arg5: memref<2x1x1x1xf32, #tpu.memory_space<vmem>>) attributes {dimension_semantics = [#tpu.dimension_semantics<parallel>], iteration_bounds = array<i64: 1>, scalar_prefetch = 0 : i64, scratch_operands = 0 : i64, tpu.core_type = #tpu.core_type<tc>, window_params = [{transform_indices = @transform_0, window_bounds = array<i64: 2, 9, 9, 1>}, {pipeline_mode = #tpu.pipeline_mode<synchronous>, transform_indices = @transform_1, window_bounds = array<i64: 4, 64>}, {pipeline_mode = #tpu.pipeline_mode<synchronous>, transform_indices = @transform_2, window_bounds = array<i64: 1, 4, 7, 64>}, {pipeline_mode = #tpu.pipeline_mode<synchronous>, transform_indices = @transform_3, window_bounds = array<i64: 1, 1, 1, 1>}, {transform_indices = @transform_4, window_bounds = array<i64: 2, 1, 1, 1>}]} {
    %c0 = arith.constant 0 : index
    %c0_0 = arith.constant 0 : index
    %c0_1 = arith.constant 0 : index
    %c0_2 = arith.constant 0 : index
    %0 = vector.load %arg1[%c0, %c0_0, %c0_1, %c0_2] : memref<2x9x9x1xf32, #tpu.memory_space<vmem>>, vector<2x9x9x1xf32>
    %c0_3 = arith.constant 0 : index
    %c0_4 = arith.constant 0 : index
    %1 = vector.load %arg2[%c0_3, %c0_4] : memref<4x64xf32, #tpu.memory_space<vmem>>, vector<4x64xf32>
    %2 = vector.extract_strided_slice %0 {offsets = [0, 0, 0, 0], sizes = [2, 8, 8, 1], strides = [1, 1, 1, 1]} : vector<2x9x9x1xf32> to vector<2x8x8x1xf32>
    %3 = vector.extract_strided_slice %1 {offsets = [0, 0], sizes = [1, 64], strides = [1, 1]} : vector<4x64xf32> to vector<1x64xf32>
    %4 = vector.shape_cast %3 : vector<1x64xf32> to vector<1x1x1x64xf32>
    %5 = vector.broadcast %2 : vector<2x8x8x1xf32> to vector<2x8x8x64xf32>
    %6 = vector.broadcast %4 : vector<1x1x1x64xf32> to vector<2x8x8x64xf32>
    %7 = arith.mulf %5, %6 : vector<2x8x8x64xf32>
    %8 = vector.extract_strided_slice %0 {offsets = [0, 0, 1, 0], sizes = [2, 8, 8, 1], strides = [1, 1, 1, 1]} : vector<2x9x9x1xf32> to vector<2x8x8x1xf32>
    %9 = vector.extract_strided_slice %1 {offsets = [1, 0], sizes = [1, 64], strides = [1, 1]} : vector<4x64xf32> to vector<1x64xf32>
    %10 = vector.shape_cast %9 : vector<1x64xf32> to vector<1x1x1x64xf32>
    %11 = vector.broadcast %8 : vector<2x8x8x1xf32> to vector<2x8x8x64xf32>
    %12 = vector.broadcast %10 : vector<1x1x1x64xf32> to vector<2x8x8x64xf32>
    %13 = arith.mulf %11, %12 : vector<2x8x8x64xf32>
    %14 = arith.addf %7, %13 : vector<2x8x8x64xf32>
    %15 = vector.extract_strided_slice %0 {offsets = [0, 1, 0, 0], sizes = [2, 8, 8, 1], strides = [1, 1, 1, 1]} : vector<2x9x9x1xf32> to vector<2x8x8x1xf32>
    %16 = vector.extract_strided_slice %1 {offsets = [2, 0], sizes = [1, 64], strides = [1, 1]} : vector<4x64xf32> to vector<1x64xf32>
    %17 = vector.shape_cast %16 : vector<1x64xf32> to vector<1x1x1x64xf32>
    %18 = vector.broadcast %15 : vector<2x8x8x1xf32> to vector<2x8x8x64xf32>
    %19 = vector.broadcast %17 : vector<1x1x1x64xf32> to vector<2x8x8x64xf32>
    %20 = arith.mulf %18, %19 : vector<2x8x8x64xf32>
    %21 = arith.addf %14, %20 : vector<2x8x8x64xf32>
    %22 = vector.extract_strided_slice %0 {offsets = [0, 1, 1, 0], sizes = [2, 8, 8, 1], strides = [1, 1, 1, 1]} : vector<2x9x9x1xf32> to vector<2x8x8x1xf32>
    %23 = vector.extract_strided_slice %1 {offsets = [3, 0], sizes = [1, 64], strides = [1, 1]} : vector<4x64xf32> to vector<1x64xf32>
    %24 = vector.shape_cast %23 : vector<1x64xf32> to vector<1x1x1x64xf32>
    %25 = vector.broadcast %22 : vector<2x8x8x1xf32> to vector<2x8x8x64xf32>
    %26 = vector.broadcast %24 : vector<1x1x1x64xf32> to vector<2x8x8x64xf32>
    %27 = arith.mulf %25, %26 : vector<2x8x8x64xf32>
    %28 = arith.addf %21, %27 : vector<2x8x8x64xf32>
    %cst = arith.constant dense<0.000000e+00> : vector<2x8x64xf32>
    %29 = vector.multi_reduction <add>, %28, %cst [2] : vector<2x8x8x64xf32> to vector<2x8x64xf32>
    %30 = vector.shape_cast %29 : vector<2x8x64xf32> to vector<2x8x1x64xf32>
    %cst_5 = arith.constant dense<0.000000e+00> : vector<2x1x64xf32>
    %31 = vector.multi_reduction <add>, %30, %cst_5 [1] : vector<2x8x1x64xf32> to vector<2x1x64xf32>
    %32 = vector.shape_cast %31 : vector<2x1x64xf32> to vector<2x1x1x64xf32>
    %cst_6 = arith.constant 1.562500e-02 : f32
    %33 = vector.broadcast %cst_6 : f32 to vector<2x1x1x64xf32>
    %34 = arith.mulf %32, %33 : vector<2x1x1x64xf32>
    %35 = vector.broadcast %34 : vector<2x1x1x64xf32> to vector<2x8x8x64xf32>
    %36 = arith.subf %28, %35 : vector<2x8x8x64xf32>
    %37 = arith.mulf %36, %36 : vector<2x8x8x64xf32>
    %cst_7 = arith.constant dense<0.000000e+00> : vector<2x8x64xf32>
    %38 = vector.multi_reduction <add>, %37, %cst_7 [2] : vector<2x8x8x64xf32> to vector<2x8x64xf32>
    %39 = vector.shape_cast %38 : vector<2x8x64xf32> to vector<2x8x1x64xf32>
    %cst_8 = arith.constant dense<0.000000e+00> : vector<2x1x64xf32>
    %40 = vector.multi_reduction <add>, %39, %cst_8 [1] : vector<2x8x1x64xf32> to vector<2x1x64xf32>
    %41 = vector.shape_cast %40 : vector<2x1x64xf32> to vector<2x1x1x64xf32>
    %cst_9 = arith.constant 1.562500e-02 : f32
    %42 = vector.broadcast %cst_9 : f32 to vector<2x1x1x64xf32>
    %43 = arith.mulf %41, %42 : vector<2x1x1x64xf32>
    %cst_10 = arith.constant 9.99999974E-6 : f32
    %44 = vector.broadcast %cst_10 : f32 to vector<2x1x1x64xf32>
    %45 = arith.addf %43, %44 : vector<2x1x1x64xf32>
    %46 = math.rsqrt %45 : vector<2x1x1x64xf32>
    %47 = vector.broadcast %46 : vector<2x1x1x64xf32> to vector<2x8x8x64xf32>
    %48 = arith.mulf %36, %47 : vector<2x8x8x64xf32>
    %cst_11 = arith.constant 0.000000e+00 : f32
    %49 = vector.broadcast %cst_11 : f32 to vector<2x8x8x64xf32>
    %50 = arith.maximumf %48, %49 : vector<2x8x8x64xf32>
    %51 = vector.shape_cast %50 : vector<2x8x8x64xf32> to vector<2x4x2x8x64xf32>
    %cst_12 = arith.constant dense<0xFF800000> : vector<2x4x8x64xf32>
    %52 = vector.multi_reduction <maximumf>, %51, %cst_12 [2] : vector<2x4x2x8x64xf32> to vector<2x4x8x64xf32>
    %53 = vector.extract_strided_slice %52 {offsets = [0, 0, 0, 0], sizes = [2, 4, 7, 64], strides = [1, 1, 1, 1]} : vector<2x4x8x64xf32> to vector<2x4x7x64xf32>
    %54 = vector.extract_strided_slice %52 {offsets = [0, 0, 1, 0], sizes = [2, 4, 7, 64], strides = [1, 1, 1, 1]} : vector<2x4x8x64xf32> to vector<2x4x7x64xf32>
    %55 = arith.maximumf %53, %54 : vector<2x4x7x64xf32>
    %56 = vector.shape_cast %55 : vector<2x4x7x64xf32> to vector<2x1x4x7x64xf32>
    %c0_13 = arith.constant 0 : index
    %c0_14 = arith.constant 0 : index
    %c0_15 = arith.constant 0 : index
    %c0_16 = arith.constant 0 : index
    %57 = vector.load %arg3[%c0_13, %c0_14, %c0_15, %c0_16] : memref<1x4x7x64xf32, #tpu.memory_space<vmem>>, vector<1x4x7x64xf32>
    %58 = vector.shape_cast %57 : vector<1x4x7x64xf32> to vector<1x1x4x7x64xf32>
    %59 = vector.broadcast %58 : vector<1x1x4x7x64xf32> to vector<2x1x4x7x64xf32>
    %60 = arith.mulf %56, %59 : vector<2x1x4x7x64xf32>
    %cst_17 = arith.constant dense<0.000000e+00> : vector<2x1x4x7xf32>
    %61 = vector.multi_reduction <add>, %60, %cst_17 [4] : vector<2x1x4x7x64xf32> to vector<2x1x4x7xf32>
    %62 = vector.shape_cast %61 : vector<2x1x4x7xf32> to vector<2x1x4x7x1xf32>
    %cst_18 = arith.constant dense<0.000000e+00> : vector<2x1x4x1xf32>
    %63 = vector.multi_reduction <add>, %62, %cst_18 [3] : vector<2x1x4x7x1xf32> to vector<2x1x4x1xf32>
    %64 = vector.shape_cast %63 : vector<2x1x4x1xf32> to vector<2x1x4x1x1xf32>
    %cst_19 = arith.constant dense<0.000000e+00> : vector<2x1x1x1xf32>
    %65 = vector.multi_reduction <add>, %64, %cst_19 [2] : vector<2x1x4x1x1xf32> to vector<2x1x1x1xf32>
    %c0_20 = arith.constant 0 : index
    %c0_21 = arith.constant 0 : index
    %c0_22 = arith.constant 0 : index
    %c0_23 = arith.constant 0 : index
    %66 = vector.load %arg4[%c0_20, %c0_21, %c0_22, %c0_23] : memref<1x1x1x1xf32, #tpu.memory_space<vmem>>, vector<1x1x1x1xf32>
    %67 = vector.broadcast %66 : vector<1x1x1x1xf32> to vector<2x1x1x1xf32>
    %68 = arith.addf %65, %67 : vector<2x1x1x1xf32>
    %c0_24 = arith.constant 0 : index
    %c0_25 = arith.constant 0 : index
    %c0_26 = arith.constant 0 : index
    %c0_27 = arith.constant 0 : index
    %69 = vector.load %arg5[%c0_24, %c0_25, %c0_26, %c0_27] : memref<2x1x1x1xf32, #tpu.memory_space<vmem>>, vector<2x1x1x1xf32>
    tpu.vector_store %arg5[%c0_24, %c0_25, %c0_26, %c0_27], %68 {strides = array<i32>} : memref<2x1x1x1xf32, #tpu.memory_space<vmem>>, vector<2x1x1x1xf32>,
    return
  }
  func.func @transform_0(%arg0: i32) -> (i32, i32, i32, i32) {
    %c0_i32 = arith.constant 0 : i32
    %c0_i32_0 = arith.constant 0 : i32
    %c0_i32_1 = arith.constant 0 : i32
    %c0_i32_2 = arith.constant 0 : i32
    return %arg0, %c0_i32, %c0_i32_0, %c0_i32_1 : i32, i32, i32, i32
  }
  func.func @transform_1(%arg0: i32) -> (i32, i32) {
    %c0_i32 = arith.constant 0 : i32
    %c0_i32_0 = arith.constant 0 : i32
    %c0_i32_1 = arith.constant 0 : i32
    return %c0_i32, %c0_i32_0 : i32, i32
  }
  func.func @transform_2(%arg0: i32) -> (i32, i32, i32, i32) {
    %c0_i32 = arith.constant 0 : i32
    %c0_i32_0 = arith.constant 0 : i32
    %c0_i32_1 = arith.constant 0 : i32
    %c0_i32_2 = arith.constant 0 : i32
    %c0_i32_3 = arith.constant 0 : i32
    return %c0_i32, %c0_i32_0, %c0_i32_1, %c0_i32_2 : i32, i32, i32, i32
  }
  func.func @transform_3(%arg0: i32) -> (i32, i32, i32, i32) {
    %c0_i32 = arith.constant 0 : i32
    %c0_i32_0 = arith.constant 0 : i32
    %c0_i32_1 = arith.constant 0 : i32
    %c0_i32_2 = arith.constant 0 : i32
    %c0_i32_3 = arith.constant 0 : i32
    return %c0_i32, %c0_i32_0, %c0_i32_1, %c0_i32_2 : i32, i32, i32, i32
  }
  func.func @transform_4(%arg0: i32) -> (i32, i32, i32, i32) {
    %c0_i32 = arith.constant 0 : i32
    %c0_i32_0 = arith.constant 0 : i32
    %c0_i32_1 = arith.constant 0 : i32
    %c0_i32_2 = arith.constant 0 : i32
    return %arg0, %c0_i32, %c0_i32_0, %c0_i32_1 : i32, i32, i32, i32
  }
}

</mosaic_0001>

<llo_original>
// kernel: cnn2datt_forward.1
$region0: #{cnn2datt_forward.1}
  #allocation0 [shape = 'u32[]', space=smem, size = 0x4, offset = 0x4, fixed_abs, tag = 'smem constant byte address 0x4 - core index']
  #allocation1 [shape = 'u32[144,128]{1,0:T(1,128)}', space=vmem, size = 0x12000, scoped, tag = 'internal scratch']
  #allocation2 [shape = 'f32[1,1,1,1]{3,2,1,0:T(1,128)S(1)}', space=vmem, size = 0x200, scoped, tag = 'scoped memory for cnn2datt_forward.1']
  %s0 = inlined_call_operand.vmem [shape: f32[2,9,9,1], index: 0, kind: input, shape index: {}]
  %s1 = inlined_call_operand.vmem [shape: f32[4,64], index: 1, kind: input, shape index: {}]
  %s2 = inlined_call_operand.vmem [shape: f32[1,4,7,64], index: 2, kind: input, shape index: {}]
  %s3 = inlined_call_operand.<no memory space> [shape: f32[1,1,1,1], index: 3, kind: input, shape index: {}]
  %s4 = inlined_call_operand.vmem [shape: f32[2,1,1,1], index: 4, kind: output, shape index: {}]
  %s5 = sld [smem:[#allocation0]]
  $region26: #{cnn2datt_forward.1} parent=0
    _
  %s7 = ssub.s32 1, %s5
  %s8 = scalar_select 0, %s7, %s5
  %v9 = vstv %s3
  %10 = vst [vmem:[#allocation2] sm:$0x1] %v9
  // Predicated region
  $region2: #{cnn2datt_forward.1} parent=0 // pred_check
    _
  $region3: #{cnn2datt_forward.1} parent=0 // pred_check_branch
    %12 = sbr.rel (0) target = $region5
  $region4: #{cnn2datt_forward.1} parent=0 // pred_region
    _
  $region5: #{cnn2datt_forward.1} parent=0 // pred_fallthru
    _
  // Predicated region
  $region6: #{cnn2datt_forward.1} parent=0 // pred_check
    _
  $region7: #{cnn2datt_forward.1} parent=0 // pred_check_branch
    %14 = sbr.rel (0) target = $region9
  $region8: #{cnn2datt_forward.1} parent=0 // pred_region
    _
  $region9: #{cnn2datt_forward.1} parent=0 // pred_fallthru
    _
  // Predicated region
  $region10: #{cnn2datt_forward.1} parent=0 // pred_check
    _
  $region11: #{cnn2datt_forward.1} parent=0 // pred_check_branch
    %16 = sbr.rel (0) target = $region13
  $region12: #{cnn2datt_forward.1} parent=0 // pred_region
    _
  $region13: #{cnn2datt_forward.1} parent=0 // pred_fallthru
    _
  // Predicated region
  $region14: #{cnn2datt_forward.1} parent=0 // pred_check
    _
  $region15: #{cnn2datt_forward.1} parent=0 // pred_check_branch
    %18 = sbr.rel (0) target = $region17
  $region16: #{cnn2datt_forward.1} parent=0 // pred_region
    _
  $region17: #{cnn2datt_forward.1} parent=0 // pred_fallthru
    _
  %v19 = vld [vmem:[%s0] sm:$0xff]
  %v20 = vld [vmem:[%s0 + $0x8] sm:$0x1]
  %v21 = vld [vmem:[%s0 + $0x10] sm:$0xff]
  %v22 = vld [vmem:[%s0 + $0x18] sm:$0x1]
  %v23 = vld [vmem:[%s0 + $0x20] sm:$0xff]
  %v24 = vld [vmem:[%s0 + $0x28] sm:$0x1]
  %v25 = vld [vmem:[%s0 + $0x30] sm:$0xff]
  %v26 = vld [vmem:[%s0 + $0x38] sm:$0x1]
  %v27 = vld [vmem:[%s0 + $0x40] sm:$0xff]
  %v28 = vld [vmem:[%s0 + $0x48] sm:$0x1]
  %v29 = vld [vmem:[%s0 + $0x50] sm:$0xff]
  %v30 = vld [vmem:[%s0 + $0x58] sm:$0x1]
  %v31 = vld [vmem:[%s0 + $0x60] sm:$0xff]
  %v32 = vld [vmem:[%s0 + $0x68] sm:$0x1]
  %v33 = vld [vmem:[%s0 + $0x70] sm:$0xff]
  %v34 = vld [vmem:[%s0 + $0x78] sm:$0x1]
  %v35 = vld [vmem:[%s0 + $0x80] sm:$0xff]
  %v36 = vld [vmem:[%s0 + $0x88] sm:$0x1]
  %v37 = vld [vmem:[%s0 + $0x90] sm:$0xff]
  %v38 = vld [vmem:[%s0 + $0x98] sm:$0x1]
  %v39 = vld [vmem:[%s0 + $0xa0] sm:$0xff]
  %v40 = vld [vmem:[%s0 + $0xa8] sm:$0x1]
  %v41 = vld [vmem:[%s0 + $0xb0] sm:$0xff]
  %v42 = vld [vmem:[%s0 + $0xb8] sm:$0x1]
  %v43 = vld [vmem:[%s0 + $0xc0] sm:$0xff]
  %v44 = vld [vmem:[%s0 + $0xc8] sm:$0x1]
  %v45 = vld [vmem:[%s0 + $0xd0] sm:$0xff]
  %v46 = vld [vmem:[%s0 + $0xd8] sm:$0x1]
  %v47 = vld [vmem:[%s0 + $0xe0] sm:$0xff]
  %v48 = vld [vmem:[%s0 + $0xe8] sm:$0x1]
  %v49 = vld [vmem:[%s0 + $0xf0] sm:$0xff]
  %v50 = vld [vmem:[%s0 + $0xf8] sm:$0x1]
  %v51 = vld [vmem:[%s0 + $0x100] sm:$0xff]
  %v52 = vld [vmem:[%s0 + $0x108] sm:$0x1]
  %v53 = vld [vmem:[%s0 + $0x110] sm:$0xff]
  %v54 = vld [vmem:[%s0 + $0x118] sm:$0x1]
  %v55 = vld [vmem:[%s1] sm:$0xf]
  %57 = vset.pattern.permute.xlu0 0
  %58 = vperm.xlu0 %57, %v19
  %v59 = vpop.permute.xlu0 %58
  %62 = vset.pattern.permute.xlu0 0
  %63 = vperm.xlu0 %62, %v21
  %v64 = vpop.permute.xlu0 %63
  %67 = vset.pattern.permute.xlu0 0
  %68 = vperm.xlu0 %67, %v23
  %v69 = vpop.permute.xlu0 %68
  %72 = vset.pattern.permute.xlu0 0
  %73 = vperm.xlu0 %72, %v25
  %v74 = vpop.permute.xlu0 %73
  %77 = vset.pattern.permute.xlu0 0
  %78 = vperm.xlu0 %77, %v27
  %v79 = vpop.permute.xlu0 %78
  %82 = vset.pattern.permute.xlu0 0
  %83 = vperm.xlu0 %82, %v29
  %v84 = vpop.permute.xlu0 %83
  %87 = vset.pattern.permute.xlu0 0
  %88 = vperm.xlu0 %87, %v31
  %v89 = vpop.permute.xlu0 %88
  %92 = vset.pattern.permute.xlu0 0
  %93 = vperm.xlu0 %92, %v33
  %v94 = vpop.permute.xlu0 %93
  %97 = vset.pattern.permute.xlu0 0
  %98 = vperm.xlu0 %97, %v37
  %v99 = vpop.permute.xlu0 %98
  %102 = vset.pattern.permute.xlu0 0
  %103 = vperm.xlu0 %102, %v39
  %v104 = vpop.permute.xlu0 %103
  %107 = vset.pattern.permute.xlu0 0
  %108 = vperm.xlu0 %107, %v41
  %v109 = vpop.permute.xlu0 %108
  %112 = vset.pattern.permute.xlu0 0
  %113 = vperm.xlu0 %112, %v43
  %v114 = vpop.permute.xlu0 %113
  %117 = vset.pattern.permute.xlu0 0
  %118 = vperm.xlu0 %117, %v45
  %v119 = vpop.permute.xlu0 %118
  %122 = vset.pattern.permute.xlu0 0
  %123 = vperm.xlu0 %122, %v47
  %v124 = vpop.permute.xlu0 %123
  %127 = vset.pattern.permute.xlu0 0
  %128 = vperm.xlu0 %127, %v49
  %v129 = vpop.permute.xlu0 %128
  %132 = vset.pattern.permute.xlu0 0
  %133 = vperm.xlu0 %132, %v51
  %v134 = vpop.permute.xlu0 %133
  %v136 = vlaneseq
  %v137 = vshrl.u32 %v136, 7
  %v138 = vsub.s32 0, %v137
  %v139 = vrot.slane %v55, %v138
  %v140 = vmul.f32 %v59, %v139
  %v141 = vmul.f32 %v64, %v139
  %v142 = vmul.f32 %v69, %v139
  %v143 = vmul.f32 %v74, %v139
  %v144 = vmul.f32 %v79, %v139
  %v145 = vmul.f32 %v84, %v139
  %v146 = vmul.f32 %v89, %v139
  %v147 = vmul.f32 %v94, %v139
  %v148 = vmul.f32 %v99, %v139
  %v149 = vmul.f32 %v104, %v139
  %v150 = vmul.f32 %v109, %v139
  %v151 = vmul.f32 %v114, %v139
  %v152 = vmul.f32 %v119, %v139
  %v153 = vmul.f32 %v124, %v139
  %v154 = vmul.f32 %v129, %v139
  %v155 = vmul.f32 %v134, %v139
  %157 = vset.pattern.permute.xlu0 0
  %158 = vperm.xlu0 %157, %v20
  %v159 = vpop.permute.xlu0 %158
  %162 = vset.pattern.permute.xlu0 0
  %163 = vperm.xlu0 %162, %v22
  %v164 = vpop.permute.xlu0 %163
  %167 = vset.pattern.permute.xlu0 0
  %168 = vperm.xlu0 %167, %v24
  %v169 = vpop.permute.xlu0 %168
  %172 = vset.pattern.permute.xlu0 0
  %173 = vperm.xlu0 %172, %v26
  %v174 = vpop.permute.xlu0 %173
  %177 = vset.pattern.permute.xlu0 0
  %178 = vperm.xlu0 %177, %v28
  %v179 = vpop.permute.xlu0 %178
  %182 = vset.pattern.permute.xlu0 0
  %183 = vperm.xlu0 %182, %v30
  %v184 = vpop.permute.xlu0 %183
  %187 = vset.pattern.permute.xlu0 0
  %188 = vperm.xlu0 %187, %v32
  %v189 = vpop.permute.xlu0 %188
  %192 = vset.pattern.permute.xlu0 0
  %193 = vperm.xlu0 %192, %v34
  %v194 = vpop.permute.xlu0 %193
  %197 = vset.pattern.permute.xlu0 0
  %198 = vperm.xlu0 %197, %v38
  %v199 = vpop.permute.xlu0 %198
  %202 = vset.pattern.permute.xlu0 0
  %203 = vperm.xlu0 %202, %v40
  %v204 = vpop.permute.xlu0 %203
  %207 = vset.pattern.permute.xlu0 0
  %208 = vperm.xlu0 %207, %v42
  %v209 = vpop.permute.xlu0 %208
  %212 = vset.pattern.permute.xlu0 0
  %213 = vperm.xlu0 %212, %v44
  %v214 = vpop.permute.xlu0 %213
  %217 = vset.pattern.permute.xlu0 0
  %218 = vperm.xlu0 %217, %v46
  %v219 = vpop.permute.xlu0 %218
  %222 = vset.pattern.permute.xlu0 0
  %223 = vperm.xlu0 %222, %v48
  %v224 = vpop.permute.xlu0 %223
  %227 = vset.pattern.permute.xlu0 0
  %228 = vperm.xlu0 %227, %v50
  %v229 = vpop.permute.xlu0 %228
  %232 = vset.pattern.permute.xlu0 0
  %233 = vperm.xlu0 %232, %v52
  %v234 = vpop.permute.xlu0 %233
  %v236 = vlaneseq
  %v237 = vshrl.u32 %v236, 7
  %v238 = vsub.s32 1, %v237
  %v239 = vrot.slane %v55, %v238
  %v240 = vmul.f32 %v59, %v239
  %v241 = vmul.f32 %v159, %v239
  %v242 = vmul.f32 %v64, %v239
  %v243 = vmul.f32 %v164, %v239
  %v244 = vmul.f32 %v69, %v239
  %v245 = vmul.f32 %v169, %v239
  %v246 = vmul.f32 %v74, %v239
  %v247 = vmul.f32 %v174, %v239
  %v248 = vmul.f32 %v79, %v239
  %v249 = vmul.f32 %v179, %v239
  %v250 = vmul.f32 %v84, %v239
  %v251 = vmul.f32 %v184, %v239
  %v252 = vmul.f32 %v89, %v239
  %v253 = vmul.f32 %v189, %v239
  %v254 = vmul.f32 %v94, %v239
  %v255 = vmul.f32 %v194, %v239
  %v256 = vmul.f32 %v99, %v239
  %v257 = vmul.f32 %v199, %v239
  %v258 = vmul.f32 %v104, %v239
  %v259 = vmul.f32 %v204, %v239
  %v260 = vmul.f32 %v109, %v239
  %v261 = vmul.f32 %v209, %v239
  %v262 = vmul.f32 %v114, %v239
  %v263 = vmul.f32 %v214, %v239
  %v264 = vmul.f32 %v119, %v239
  %v265 = vmul.f32 %v219, %v239
  %v266 = vmul.f32 %v124, %v239
  %v267 = vmul.f32 %v224, %v239
  %v268 = vmul.f32 %v129, %v239
  %v269 = vmul.f32 %v229, %v239
  %v270 = vmul.f32 %v134, %v239
  %v271 = vmul.f32 %v234, %v239
  %vm304 = vcmask 1046528
  %v305 = vrot.slane %v240, 1
  %v306 = vrot.slane %v241, 1
  %v307 = vsel %vm304, %v305, %v306
  %v308 = vrot.slane %v242, 1
  %v309 = vrot.slane %v243, 1
  %v310 = vsel %vm304, %v308, %v309
  %v311 = vrot.slane %v244, 1
  %v312 = vrot.slane %v245, 1
  %v313 = vsel %vm304, %v311, %v312
  %v314 = vrot.slane %v246, 1
  %v315 = vrot.slane %v247, 1
  %v316 = vsel %vm304, %v314, %v315
  %v317 = vrot.slane %v248, 1
  %v318 = vrot.slane %v249, 1
  %v319 = vsel %vm304, %v317, %v318
  %v320 = vrot.slane %v250, 1
  %v321 = vrot.slane %v251, 1
  %v322 = vsel %vm304, %v320, %v321
  %v323 = vrot.slane %v252, 1
  %v324 = vrot.slane %v253, 1
  %v325 = vsel %vm304, %v323, %v324
  %v326 = vrot.slane %v254, 1
  %v327 = vrot.slane %v255, 1
  %v328 = vsel %vm304, %v326, %v327
  %v329 = vrot.slane %v256, 1
  %v330 = vrot.slane %v257, 1
  %v331 = vsel %vm304, %v329, %v330
  %v332 = vrot.slane %v258, 1
  %v333 = vrot.slane %v259, 1
  %v334 = vsel %vm304, %v332, %v333
  %v335 = vrot.slane %v260, 1
  %v336 = vrot.slane %v261, 1
  %v337 = vsel %vm304, %v335, %v336
  %v338 = vrot.slane %v262, 1
  %v339 = vrot.slane %v263, 1
  %v340 = vsel %vm304, %v338, %v339
  %v341 = vrot.slane %v264, 1
  %v342 = vrot.slane %v265, 1
  %v343 = vsel %vm304, %v341, %v342
  %v344 = vrot.slane %v266, 1
  %v345 = vrot.slane %v267, 1
  %v346 = vsel %vm304, %v344, %v345
  %v347 = vrot.slane %v268, 1
  %v348 = vrot.slane %v269, 1
  %v349 = vsel %vm304, %v347, %v348
  %v350 = vrot.slane %v270, 1
  %v351 = vrot.slane %v271, 1
  %v352 = vsel %vm304, %v350, %v351
  %v369 = vadd.f32 %v140, %v307
  %v370 = vadd.f32 %v141, %v310
  %v371 = vadd.f32 %v142, %v313
  %v372 = vadd.f32 %v143, %v316
  %v373 = vadd.f32 %v144, %v319
  %v374 = vadd.f32 %v145, %v322
  %v375 = vadd.f32 %v146, %v325
  %v376 = vadd.f32 %v147, %v328
  %v377 = vadd.f32 %v148, %v331
  %v378 = vadd.f32 %v149, %v334
  %v379 = vadd.f32 %v150, %v337
  %v380 = vadd.f32 %v151, %v340
  %v381 = vadd.f32 %v152, %v343
  %v382 = vadd.f32 %v153, %v346
  %v383 = vadd.f32 %v154, %v349
  %v384 = vadd.f32 %v155, %v352
  %386 = vset.pattern.permute.xlu0 0
  %387 = vperm.xlu0 %386, %v35
  %v388 = vpop.permute.xlu0 %387
  %391 = vset.pattern.permute.xlu0 0
  %392 = vperm.xlu0 %391, %v53
  %v393 = vpop.permute.xlu0 %392
  %v395 = vlaneseq
  %v396 = vshrl.u32 %v395, 7
  %v397 = vsub.s32 2, %v396
  %v398 = vrot.slane %v55, %v397
  %v399 = vmul.f32 %v64, %v398
  %v400 = vmul.f32 %v69, %v398
  %v401 = vmul.f32 %v74, %v398
  %v402 = vmul.f32 %v79, %v398
  %v403 = vmul.f32 %v84, %v398
  %v404 = vmul.f32 %v89, %v398
  %v405 = vmul.f32 %v94, %v398
  %v406 = vmul.f32 %v388, %v398
  %v407 = vmul.f32 %v104, %v398
  %v408 = vmul.f32 %v109, %v398
  %v409 = vmul.f32 %v114, %v398
  %v410 = vmul.f32 %v119, %v398
  %v411 = vmul.f32 %v124, %v398
  %v412 = vmul.f32 %v129, %v398
  %v413 = vmul.f32 %v134, %v398
  %v414 = vmul.f32 %v393, %v398
  %v415 = vadd.f32 %v369, %v399
  %v416 = vadd.f32 %v370, %v400
  %v417 = vadd.f32 %v371, %v401
  %v418 = vadd.f32 %v372, %v402
  %v419 = vadd.f32 %v373, %v403
  %v420 = vadd.f32 %v374, %v404
  %v421 = vadd.f32 %v375, %v405
  %v422 = vadd.f32 %v376, %v406
  %v423 = vadd.f32 %v377, %v407
  %v424 = vadd.f32 %v378, %v408
  %v425 = vadd.f32 %v379, %v409
  %v426 = vadd.f32 %v380, %v410
  %v427 = vadd.f32 %v381, %v411
  %v428 = vadd.f32 %v382, %v412
  %v429 = vadd.f32 %v383, %v413
  %v430 = vadd.f32 %v384, %v414
  %432 = vset.pattern.permute.xlu0 0
  %433 = vperm.xlu0 %432, %v36
  %v434 = vpop.permute.xlu0 %433
  %437 = vset.pattern.permute.xlu0 0
  %438 = vperm.xlu0 %437, %v54
  %v439 = vpop.permute.xlu0 %438
  %v441 = vlaneseq
  %v442 = vshrl.u32 %v441, 7
  %v443 = vsub.s32 3, %v442
  %v444 = vrot.slane %v55, %v443
  %v445 = vmul.f32 %v64, %v444
  %v446 = vmul.f32 %v164, %v444
  %v447 = vmul.f32 %v69, %v444
  %v448 = vmul.f32 %v169, %v444
  %v449 = vmul.f32 %v74, %v444
  %v450 = vmul.f32 %v174, %v444
  %v451 = vmul.f32 %v79, %v444
  %v452 = vmul.f32 %v179, %v444
  %v453 = vmul.f32 %v84, %v444
  %v454 = vmul.f32 %v184, %v444
  %v455 = vmul.f32 %v89, %v444
  %v456 = vmul.f32 %v189, %v444
  %v457 = vmul.f32 %v94, %v444
  %v458 = vmul.f32 %v194, %v444
  %v459 = vmul.f32 %v388, %v444
  %v460 = vmul.f32 %v434, %v444
  %v461 = vmul.f32 %v104, %v444
  %v462 = vmul.f32 %v204, %v444
  %v463 = vmul.f32 %v109, %v444
  %v464 = vmul.f32 %v209, %v444
  %v465 = vmul.f32 %v114, %v444
  %v466 = vmul.f32 %v214, %v444
  %v467 = vmul.f32 %v119, %v444
  %v468 = vmul.f32 %v219, %v444
  %v469 = vmul.f32 %v124, %v444
  %v470 = vmul.f32 %v224, %v444
  %v471 = vmul.f32 %v129, %v444
  %v472 = vmul.f32 %v229, %v444
  %v473 = vmul.f32 %v134, %v444
  %v474 = vmul.f32 %v234, %v444
  %v475 = vmul.f32 %v393, %v444
  %v476 = vmul.f32 %v439, %v444
  %v509 = vrot.slane %v445, 1
  %v510 = vrot.slane %v446, 1
  %v511 = vsel %vm304, %v509, %v510
  %v512 = vrot.slane %v447, 1
  %v513 = vrot.slane %v448, 1
  %v514 = vsel %vm304, %v512, %v513
  %v515 = vrot.slane %v449, 1
  %v516 = vrot.slane %v450, 1
  %v517 = vsel %vm304, %v515, %v516
  %v518 = vrot.slane %v451, 1
  %v519 = vrot.slane %v452, 1
  %v520 = vsel %vm304, %v518, %v519
  %v521 = vrot.slane %v453, 1
  %v522 = vrot.slane %v454, 1
  %v523 = vsel %vm304, %v521, %v522
  %v524 = vrot.slane %v455, 1
  %v525 = vrot.slane %v456, 1
  %v526 = vsel %vm304, %v524, %v525
  %v527 = vrot.slane %v457, 1
  %v528 = vrot.slane %v458, 1
  %v529 = vsel %vm304, %v527, %v528
  %v530 = vrot.slane %v459, 1
  %v531 = vrot.slane %v460, 1
  %v532 = vsel %vm304, %v530, %v531
  %v533 = vrot.slane %v461, 1
  %v534 = vrot.slane %v462, 1
  %v535 = vsel %vm304, %v533, %v534
  %v536 = vrot.slane %v463, 1
  %v537 = vrot.slane %v464, 1
  %v538 = vsel %vm304, %v536, %v537
  %v539 = vrot.slane %v465, 1
  %v540 = vrot.slane %v466, 1
  %v541 = vsel %vm304, %v539, %v540
  %v542 = vrot.slane %v467, 1
  %v543 = vrot.slane %v468, 1
  %v544 = vsel %vm304, %v542, %v543
  %v545 = vrot.slane %v469, 1
  %v546 = vrot.slane %v470, 1
  %v547 = vsel %vm304, %v545, %v546
  %v548 = vrot.slane %v471, 1
  %v549 = vrot.slane %v472, 1
  %v550 = vsel %vm304, %v548, %v549
  %v551 = vrot.slane %v473, 1
  %v552 = vrot.slane %v474, 1
  %v553 = vsel %vm304, %v551, %v552
  %v554 = vrot.slane %v475, 1
  %v555 = vrot.slane %v476, 1
  %v556 = vsel %vm304, %v554, %v555
  %v573 = vadd.f32 %v415, %v511
  %v574 = vadd.f32 %v416, %v514
  %v575 = vadd.f32 %v417, %v517
  %v576 = vadd.f32 %v418, %v520
  %v577 = vadd.f32 %v419, %v523
  %v578 = vadd.f32 %v420, %v526
  %v579 = vadd.f32 %v421, %v529
  %v580 = vadd.f32 %v422, %v532
  %v581 = vadd.f32 %v423, %v535
  %v582 = vadd.f32 %v424, %v538
  %v583 = vadd.f32 %v425, %v541
  %v584 = vadd.f32 %v426, %v544
  %v585 = vadd.f32 %v427, %v547
  %v586 = vadd.f32 %v428, %v550
  %v587 = vadd.f32 %v429, %v553
  %v588 = vadd.f32 %v430, %v556
  %vm589 = vcmask 523264
  %v590 = vsel %vm589, %v573, 0.0
  %v591 = vrot.slane %v590, 4
  %v592 = vadd.f32 %v590, %v591
  %v593 = vrot.slane %v592, 2
  %v594 = vadd.f32 %v592, %v593
  %v595 = vrot.slane %v594, 1
  %v596 = vadd.f32 %v594, %v595
  %v597 = vsel %vm589, %v574, 0.0
  %v598 = vrot.slane %v597, 4
  %v599 = vadd.f32 %v597, %v598
  %v600 = vrot.slane %v599, 2
  %v601 = vadd.f32 %v599, %v600
  %v602 = vrot.slane %v601, 1
  %v603 = vadd.f32 %v601, %v602
  %v604 = vsel %vm589, %v575, 0.0
  %v605 = vrot.slane %v604, 4
  %v606 = vadd.f32 %v604, %v605
  %v607 = vrot.slane %v606, 2
  %v608 = vadd.f32 %v606, %v607
  %v609 = vrot.slane %v608, 1
  %v610 = vadd.f32 %v608, %v609
  %v611 = vsel %vm589, %v576, 0.0
  %v612 = vrot.slane %v611, 4
  %v613 = vadd.f32 %v611, %v612
  %v614 = vrot.slane %v613, 2
  %v615 = vadd.f32 %v613, %v614
  %v616 = vrot.slane %v615, 1
  %v617 = vadd.f32 %v615, %v616
  %v618 = vsel %vm589, %v577, 0.0
  %v619 = vrot.slane %v618, 4
  %v620 = vadd.f32 %v618, %v619
  %v621 = vrot.slane %v620, 2
  %v622 = vadd.f32 %v620, %v621
  %v623 = vrot.slane %v622, 1
  %v624 = vadd.f32 %v622, %v623
  %v625 = vsel %vm589, %v578, 0.0
  %v626 = vrot.slane %v625, 4
  %v627 = vadd.f32 %v625, %v626
  %v628 = vrot.slane %v627, 2
  %v629 = vadd.f32 %v627, %v628
  %v630 = vrot.slane %v629, 1
  %v631 = vadd.f32 %v629, %v630
  %v632 = vsel %vm589, %v579, 0.0
  %v633 = vrot.slane %v632, 4
  %v634 = vadd.f32 %v632, %v633
  %v635 = vrot.slane %v634, 2
  %v636 = vadd.f32 %v634, %v635
  %v637 = vrot.slane %v636, 1
  %v638 = vadd.f32 %v636, %v637
  %v639 = vsel %vm589, %v580, 0.0
  %v640 = vrot.slane %v639, 4
  %v641 = vadd.f32 %v639, %v640
  %v642 = vrot.slane %v641, 2
  %v643 = vadd.f32 %v641, %v642
  %v644 = vrot.slane %v643, 1
  %v645 = vadd.f32 %v643, %v644
  %v646 = vsel %vm589, %v581, 0.0
  %v647 = vrot.slane %v646, 4
  %v648 = vadd.f32 %v646, %v647
  %v649 = vrot.slane %v648, 2
  %v650 = vadd.f32 %v648, %v649
  %v651 = vrot.slane %v650, 1
  %v652 = vadd.f32 %v650, %v651
  %v653 = vsel %vm589, %v582, 0.0
  %v654 = vrot.slane %v653, 4
  %v655 = vadd.f32 %v653, %v654
  %v656 = vrot.slane %v655, 2
  %v657 = vadd.f32 %v655, %v656
  %v658 = vrot.slane %v657, 1
  %v659 = vadd.f32 %v657, %v658
  %v660 = vsel %vm589, %v583, 0.0
  %v661 = vrot.slane %v660, 4
  %v662 = vadd.f32 %v660, %v661
  %v663 = vrot.slane %v662, 2
  %v664 = vadd.f32 %v662, %v663
  %v665 = vrot.slane %v664, 1
  %v666 = vadd.f32 %v664, %v665
  %v667 = vsel %vm589, %v584, 0.0
  %v668 = vrot.slane %v667, 4
  %v669 = vadd.f32 %v667, %v668
  %v670 = vrot.slane %v669, 2
  %v671 = vadd.f32 %v669, %v670
  %v672 = vrot.slane %v671, 1
  %v673 = vadd.f32 %v671, %v672
  %v674 = vsel %vm589, %v585, 0.0
  %v675 = vrot.slane %v674, 4
  %v676 = vadd.f32 %v674, %v675
  %v677 = vrot.slane %v676, 2
  %v678 = vadd.f32 %v676, %v677
  %v679 = vrot.slane %v678, 1
  %v680 = vadd.f32 %v678, %v679
  %v681 = vsel %vm589, %v586, 0.0
  %v682 = vrot.slane %v681, 4
  %v683 = vadd.f32 %v681, %v682
  %v684 = vrot.slane %v683, 2
  %v685 = vadd.f32 %v683, %v684
  %v686 = vrot.slane %v685, 1
  %v687 = vadd.f32 %v685, %v686
  %v688 = vsel %vm589, %v587, 0.0
  %v689 = vrot.slane %v688, 4
  %v690 = vadd.f32 %v688, %v689
  %v691 = vrot.slane %v690, 2
  %v692 = vadd.f32 %v690, %v691
  %v693 = vrot.slane %v692, 1
  %v694 = vadd.f32 %v692, %v693
  %v695 = vsel %vm589, %v588, 0.0
  %v696 = vrot.slane %v695, 4
  %v697 = vadd.f32 %v695, %v696
  %v698 = vrot.slane %v697, 2
  %v699 = vadd.f32 %v697, %v698
  %v700 = vrot.slane %v699, 1
  %v701 = vadd.f32 %v699, %v700
  %v702 = vsel %vm589, %v596, 0.0
  %v703 = vsel %vm589, %v603, 0.0
  %v704 = vadd.f32 %v702, %v703
  %v705 = vsel %vm589, %v610, 0.0
  %v706 = vadd.f32 %v704, %v705
  %v707 = vsel %vm589, %v617, 0.0
  %v708 = vadd.f32 %v706, %v707
  %v709 = vsel %vm589, %v624, 0.0
  %v710 = vadd.f32 %v708, %v709
  %v711 = vsel %vm589, %v631, 0.0
  %v712 = vadd.f32 %v710, %v711
  %v713 = vsel %vm589, %v638, 0.0
  %v714 = vadd.f32 %v712, %v713
  %v715 = vsel %vm589, %v645, 0.0
  %v716 = vadd.f32 %v714, %v715
  %v717 = vsel %vm589, %v652, 0.0
  %v718 = vsel %vm589, %v659, 0.0
  %v719 = vadd.f32 %v717, %v718
  %v720 = vsel %vm589, %v666, 0.0
  %v721 = vadd.f32 %v719, %v720
  %v722 = vsel %vm589, %v673, 0.0
  %v723 = vadd.f32 %v721, %v722
  %v724 = vsel %vm589, %v680, 0.0
  %v725 = vadd.f32 %v723, %v724
  %v726 = vsel %vm589, %v687, 0.0
  %v727 = vadd.f32 %v725, %v726
  %v728 = vsel %vm589, %v694, 0.0
  %v729 = vadd.f32 %v727, %v728
  %v730 = vsel %vm589, %v701, 0.0
  %v731 = vadd.f32 %v729, %v730
  %v732 = vmul.f32 %v716, 0.015625
  %v733 = vmul.f32 %v731, 0.015625
  %v734 = vsub.f32 %v573, %v732
  %v735 = vsub.f32 %v574, %v732
  %v736 = vsub.f32 %v575, %v732
  %v737 = vsub.f32 %v576, %v732
  %v738 = vsub.f32 %v577, %v732
  %v739 = vsub.f32 %v578, %v732
  %v740 = vsub.f32 %v579, %v732
  %v741 = vsub.f32 %v580, %v732
  %v742 = vsub.f32 %v581, %v733
  %v743 = vsub.f32 %v582, %v733
  %v744 = vsub.f32 %v583, %v733
  %v745 = vsub.f32 %v584, %v733
  %v746 = vsub.f32 %v585, %v733
  %v747 = vsub.f32 %v586, %v733
  %v748 = vsub.f32 %v587, %v733
  %v749 = vsub.f32 %v588, %v733
  %v750 = vmul.f32 %v734, %v734
  %v751 = vmul.f32 %v735, %v735
  %v752 = vmul.f32 %v736, %v736
  %v753 = vmul.f32 %v737, %v737
  %v754 = vmul.f32 %v738, %v738
  %v755 = vmul.f32 %v739, %v739
  %v756 = vmul.f32 %v740, %v740
  %v757 = vmul.f32 %v741, %v741
  %v758 = vmul.f32 %v742, %v742
  %v759 = vmul.f32 %v743, %v743
  %v760 = vmul.f32 %v744, %v744
  %v761 = vmul.f32 %v745, %v745
  %v762 = vmul.f32 %v746, %v746
  %v763 = vmul.f32 %v747, %v747
  %v764 = vmul.f32 %v748, %v748
  %v765 = vmul.f32 %v749, %v749
  %v766 = vsel %vm589, %v750, 0.0
  %v767 = vrot.slane %v766, 4
  %v768 = vadd.f32 %v766, %v767
  %v769 = vrot.slane %v768, 2
  %v770 = vadd.f32 %v768, %v769
  %v771 = vrot.slane %v770, 1
  %v772 = vadd.f32 %v770, %v771
  %v773 = vsel %vm589, %v751, 0.0
  %v774 = vrot.slane %v773, 4
  %v775 = vadd.f32 %v773, %v774
  %v776 = vrot.slane %v775, 2
  %v777 = vadd.f32 %v775, %v776
  %v778 = vrot.slane %v777, 1
  %v779 = vadd.f32 %v777, %v778
  %v780 = vsel %vm589, %v752, 0.0
  %v781 = vrot.slane %v780, 4
  %v782 = vadd.f32 %v780, %v781
  %v783 = vrot.slane %v782, 2
  %v784 = vadd.f32 %v782, %v783
  %v785 = vrot.slane %v784, 1
  %v786 = vadd.f32 %v784, %v785
  %v787 = vsel %vm589, %v753, 0.0
  %v788 = vrot.slane %v787, 4
  %v789 = vadd.f32 %v787, %v788
  %v790 = vrot.slane %v789, 2
  %v791 = vadd.f32 %v789, %v790
  %v792 = vrot.slane %v791, 1
  %v793 = vadd.f32 %v791, %v792
  %v794 = vsel %vm589, %v754, 0.0
  %v795 = vrot.slane %v794, 4
  %v796 = vadd.f32 %v794, %v795
  %v797 = vrot.slane %v796, 2
  %v798 = vadd.f32 %v796, %v797
  %v799 = vrot.slane %v798, 1
  %v800 = vadd.f32 %v798, %v799
  %v801 = vsel %vm589, %v755, 0.0
  %v802 = vrot.slane %v801, 4
  %v803 = vadd.f32 %v801, %v802
  %v804 = vrot.slane %v803, 2
  %v805 = vadd.f32 %v803, %v804
  %v806 = vrot.slane %v805, 1
  %v807 = vadd.f32 %v805, %v806
  %v808 = vsel %vm589, %v756, 0.0
  %v809 = vrot.slane %v808, 4
  %v810 = vadd.f32 %v808, %v809
  %v811 = vrot.slane %v810, 2
  %v812 = vadd.f32 %v810, %v811
  %v813 = vrot.slane %v812, 1
  %v814 = vadd.f32 %v812, %v813
  %v815 = vsel %vm589, %v757, 0.0
  %v816 = vrot.slane %v815, 4
  %v817 = vadd.f32 %v815, %v816
  %v818 = vrot.slane %v817, 2
  %v819 = vadd.f32 %v817, %v818
  %v820 = vrot.slane %v819, 1
  %v821 = vadd.f32 %v819, %v820
  %v822 = vsel %vm589, %v758, 0.0
  %v823 = vrot.slane %v822, 4
  %v824 = vadd.f32 %v822, %v823
  %v825 = vrot.slane %v824, 2
  %v826 = vadd.f32 %v824, %v825
  %v827 = vrot.slane %v826, 1
  %v828 = vadd.f32 %v826, %v827
  %v829 = vsel %vm589, %v759, 0.0
  %v830 = vrot.slane %v829, 4
  %v831 = vadd.f32 %v829, %v830
  %v832 = vrot.slane %v831, 2
  %v833 = vadd.f32 %v831, %v832
  %v834 = vrot.slane %v833, 1
  %v835 = vadd.f32 %v833, %v834
  %v836 = vsel %vm589, %v760, 0.0
  %v837 = vrot.slane %v836, 4
  %v838 = vadd.f32 %v836, %v837
  %v839 = vrot.slane %v838, 2
  %v840 = vadd.f32 %v838, %v839
  %v841 = vrot.slane %v840, 1
  %v842 = vadd.f32 %v840, %v841
  %v843 = vsel %vm589, %v761, 0.0
  %v844 = vrot.slane %v843, 4
  %v845 = vadd.f32 %v843, %v844
  %v846 = vrot.slane %v845, 2
  %v847 = vadd.f32 %v845, %v846
  %v848 = vrot.slane %v847, 1
  %v849 = vadd.f32 %v847, %v848
  %v850 = vsel %vm589, %v762, 0.0
  %v851 = vrot.slane %v850, 4
  %v852 = vadd.f32 %v850, %v851
  %v853 = vrot.slane %v852, 2
  %v854 = vadd.f32 %v852, %v853
  %v855 = vrot.slane %v854, 1
  %v856 = vadd.f32 %v854, %v855
  %v857 = vsel %vm589, %v763, 0.0
  %v858 = vrot.slane %v857, 4
  %v859 = vadd.f32 %v857, %v858
  %v860 = vrot.slane %v859, 2
  %v861 = vadd.f32 %v859, %v860
  %v862 = vrot.slane %v861, 1
  %v863 = vadd.f32 %v861, %v862
  %v864 = vsel %vm589, %v764, 0.0
  %v865 = vrot.slane %v864, 4
  %v866 = vadd.f32 %v864, %v865
  %v867 = vrot.slane %v866, 2
  %v868 = vadd.f32 %v866, %v867
  %v869 = vrot.slane %v868, 1
  %v870 = vadd.f32 %v868, %v869
  %v871 = vsel %vm589, %v765, 0.0
  %v872 = vrot.slane %v871, 4
  %v873 = vadd.f32 %v871, %v872
  %v874 = vrot.slane %v873, 2
  %v875 = vadd.f32 %v873, %v874
  %v876 = vrot.slane %v875, 1
  %v877 = vadd.f32 %v875, %v876
  %v878 = vsel %vm589, %v772, 0.0
  %v879 = vsel %vm589, %v779, 0.0
  %v880 = vadd.f32 %v878, %v879
  %v881 = vsel %vm589, %v786, 0.0
  %v882 = vadd.f32 %v880, %v881
  %v883 = vsel %vm589, %v793, 0.0
  %v884 = vadd.f32 %v882, %v883
  %v885 = vsel %vm589, %v800, 0.0
  %v886 = vadd.f32 %v884, %v885
  %v887 = vsel %vm589, %v807, 0.0
  %v888 = vadd.f32 %v886, %v887
  %v889 = vsel %vm589, %v814, 0.0
  %v890 = vadd.f32 %v888, %v889
  %v891 = vsel %vm589, %v821, 0.0
  %v892 = vadd.f32 %v890, %v891
  %v893 = vsel %vm589, %v828, 0.0
  %v894 = vsel %vm589, %v835, 0.0
  %v895 = vadd.f32 %v893, %v894
  %v896 = vsel %vm589, %v842, 0.0
  %v897 = vadd.f32 %v895, %v896
  %v898 = vsel %vm589, %v849, 0.0
  %v899 = vadd.f32 %v897, %v898
  %v900 = vsel %vm589, %v856, 0.0
  %v901 = vadd.f32 %v899, %v900
  %v902 = vsel %vm589, %v863, 0.0
  %v903 = vadd.f32 %v901, %v902
  %v904 = vsel %vm589, %v870, 0.0
  %v905 = vadd.f32 %v903, %v904
  %v906 = vsel %vm589, %v877, 0.0
  %v907 = vadd.f32 %v905, %v906
  %v908 = vmul.f32 %v892, 0.015625
  %v909 = vmul.f32 %v907, 0.015625
  %v910 = vadd.f32 %v908, 1e-05
  %v911 = vadd.f32 %v909, 1e-05
  %v912 = vrsqrt.pop %v910
  %v913 = vrsqrt.pop %v911
  %v914 = vmul.f32 %v734, %v912
  %v915 = vmul.f32 %v735, %v912
  %v916 = vmul.f32 %v736, %v912
  %v917 = vmul.f32 %v737, %v912
  %v918 = vmul.f32 %v738, %v912
  %v919 = vmul.f32 %v739, %v912
  %v920 = vmul.f32 %v740, %v912
  %v921 = vmul.f32 %v741, %v912
  %v922 = vmul.f32 %v742, %v913
  %v923 = vmul.f32 %v743, %v913
  %v924 = vmul.f32 %v744, %v913
  %v925 = vmul.f32 %v745, %v913
  %v926 = vmul.f32 %v746, %v913
  %v927 = vmul.f32 %v747, %v913
  %v928 = vmul.f32 %v748, %v913
  %v929 = vmul.f32 %v749, %v913
  %v930 = vmax.f32 %v914, 0.0
  %v931 = vmax.f32 %v915, 0.0
  %v932 = vmax.f32 %v916, 0.0
  %v933 = vmax.f32 %v917, 0.0
  %v934 = vmax.f32 %v918, 0.0
  %v935 = vmax.f32 %v919, 0.0
  %v936 = vmax.f32 %v920, 0.0
  %v937 = vmax.f32 %v921, 0.0
  %v938 = vmax.f32 %v922, 0.0
  %v939 = vmax.f32 %v923, 0.0
  %v940 = vmax.f32 %v924, 0.0
  %v941 = vmax.f32 %v925, 0.0
  %v942 = vmax.f32 %v926, 0.0
  %v943 = vmax.f32 %v927, 0.0
  %v944 = vmax.f32 %v928, 0.0
  %v945 = vmax.f32 %v929, 0.0
  %v946 = vsel %vm589, %v930, -inf
  %v947 = vsel %vm589, %v931, -inf
  %v948 = vmax.f32 %v946, %v947
  %v949 = vsel %vm589, %v932, -inf
  %v950 = vsel %vm589, %v933, -inf
  %v951 = vmax.f32 %v949, %v950
  %v952 = vsel %vm589, %v934, -inf
  %v953 = vsel %vm589, %v935, -inf
  %v954 = vmax.f32 %v952, %v953
  %v955 = vsel %vm589, %v936, -inf
  %v956 = vsel %vm589, %v937, -inf
  %v957 = vmax.f32 %v955, %v956
  %v958 = vsel %vm589, %v938, -inf
  %v959 = vsel %vm589, %v939, -inf
  %v960 = vmax.f32 %v958, %v959
  %v961 = vsel %vm589, %v940, -inf
  %v962 = vsel %vm589, %v941, -inf
  %v963 = vmax.f32 %v961, %v962
  %v964 = vsel %vm589, %v942, -inf
  %v965 = vsel %vm589, %v943, -inf
  %v966 = vmax.f32 %v964, %v965
  %v967 = vsel %vm589, %v944, -inf
  %v968 = vsel %vm589, %v945, -inf
  %v969 = vmax.f32 %v967, %v968
  %v978 = vrot.slane %v948, 1
  %v979 = vrot.slane %v951, 1
  %v980 = vrot.slane %v954, 1
  %v981 = vrot.slane %v957, 1
  %v982 = vrot.slane %v960, 1
  %v983 = vrot.slane %v963, 1
  %v984 = vrot.slane %v966, 1
  %v985 = vrot.slane %v969, 1
  %v994 = vmax.f32 %v948, %v978
  %v995 = vmax.f32 %v951, %v979
  %v996 = vmax.f32 %v954, %v980
  %v997 = vmax.f32 %v957, %v981
  %v998 = vmax.f32 %v960, %v982
  %v999 = vmax.f32 %v963, %v983
  %v1000 = vmax.f32 %v966, %v984
  %v1001 = vmax.f32 %v969, %v985
  %v1002 = vld [vmem:[%s2] sm:$0x7f]
  %v1003 = vld [vmem:[%s2 + $0x8] sm:$0x7f]
  %v1004 = vld [vmem:[%s2 + $0x10] sm:$0x7f]
  %v1005 = vld [vmem:[%s2 + $0x18] sm:$0x7f]
  %v1006 = vmul.f32 %v994, %v1002
  %v1007 = vmul.f32 %v995, %v1003
  %v1008 = vmul.f32 %v996, %v1004
  %v1009 = vmul.f32 %v997, %v1005
  %v1010 = vmul.f32 %v998, %v1002
  %v1011 = vmul.f32 %v999, %v1003
  %v1012 = vmul.f32 %v1000, %v1004
  %v1013 = vmul.f32 %v1001, %v1005
  %vm1014 = vcmask 522240
  %v1015 = vsel %vm1014, %v1006, 0.0
  %1016 = vadd.xlane.f32.xlu0 %v1015
  %v1017 = vpop.xlane.xlu0 %1016
  %v1018 = vsel %vm1014, %v1007, 0.0
  %1019 = vadd.xlane.f32.xlu0 %v1018
  %v1020 = vpop.xlane.xlu0 %1019
  %v1021 = vsel %vm1014, %v1008, 0.0
  %1022 = vadd.xlane.f32.xlu0 %v1021
  %v1023 = vpop.xlane.xlu0 %1022
  %v1024 = vsel %vm1014, %v1009, 0.0
  %1025 = vadd.xlane.f32.xlu0 %v1024
  %v1026 = vpop.xlane.xlu0 %1025
  %v1027 = vsel %vm1014, %v1010, 0.0
  %1028 = vadd.xlane.f32.xlu0 %v1027
  %v1029 = vpop.xlane.xlu0 %1028
  %v1030 = vsel %vm1014, %v1011, 0.0
  %1031 = vadd.xlane.f32.xlu0 %v1030
  %v1032 = vpop.xlane.xlu0 %1031
  %v1033 = vsel %vm1014, %v1012, 0.0
  %1034 = vadd.xlane.f32.xlu0 %v1033
  %v1035 = vpop.xlane.xlu0 %1034
  %v1036 = vsel %vm1014, %v1013, 0.0
  %1037 = vadd.xlane.f32.xlu0 %v1036
  %v1038 = vpop.xlane.xlu0 %1037
  %v1039 = vsel %vm304, %v1017, 0.0
  %v1040 = vrot.slane %v1039, 4
  %v1041 = vadd.f32 %v1039, %v1040
  %v1042 = vrot.slane %v1041, 2
  %v1043 = vadd.f32 %v1041, %v1042
  %v1044 = vrot.slane %v1043, 1
  %v1045 = vadd.f32 %v1043, %v1044
  %v1046 = vsel %vm304, %v1020, 0.0
  %v1047 = vrot.slane %v1046, 4
  %v1048 = vadd.f32 %v1046, %v1047
  %v1049 = vrot.slane %v1048, 2
  %v1050 = vadd.f32 %v1048, %v1049
  %v1051 = vrot.slane %v1050, 1
  %v1052 = vadd.f32 %v1050, %v1051
  %v1053 = vsel %vm304, %v1023, 0.0
  %v1054 = vrot.slane %v1053, 4
  %v1055 = vadd.f32 %v1053, %v1054
  %v1056 = vrot.slane %v1055, 2
  %v1057 = vadd.f32 %v1055, %v1056
  %v1058 = vrot.slane %v1057, 1
  %v1059 = vadd.f32 %v1057, %v1058
  %v1060 = vsel %vm304, %v1026, 0.0
  %v1061 = vrot.slane %v1060, 4
  %v1062 = vadd.f32 %v1060, %v1061
  %v1063 = vrot.slane %v1062, 2
  %v1064 = vadd.f32 %v1062, %v1063
  %v1065 = vrot.slane %v1064, 1
  %v1066 = vadd.f32 %v1064, %v1065
  %v1067 = vsel %vm304, %v1029, 0.0
  %v1068 = vrot.slane %v1067, 4
  %v1069 = vadd.f32 %v1067, %v1068
  %v1070 = vrot.slane %v1069, 2
  %v1071 = vadd.f32 %v1069, %v1070
  %v1072 = vrot.slane %v1071, 1
  %v1073 = vadd.f32 %v1071, %v1072
  %v1074 = vsel %vm304, %v1032, 0.0
  %v1075 = vrot.slane %v1074, 4
  %v1076 = vadd.f32 %v1074, %v1075
  %v1077 = vrot.slane %v1076, 2
  %v1078 = vadd.f32 %v1076, %v1077
  %v1079 = vrot.slane %v1078, 1
  %v1080 = vadd.f32 %v1078, %v1079
  %v1081 = vsel %vm304, %v1035, 0.0
  %v1082 = vrot.slane %v1081, 4
  %v1083 = vadd.f32 %v1081, %v1082
  %v1084 = vrot.slane %v1083, 2
  %v1085 = vadd.f32 %v1083, %v1084
  %v1086 = vrot.slane %v1085, 1
  %v1087 = vadd.f32 %v1085, %v1086
  %v1088 = vsel %vm304, %v1038, 0.0
  %v1089 = vrot.slane %v1088, 4
  %v1090 = vadd.f32 %v1088, %v1089
  %v1091 = vrot.slane %v1090, 2
  %v1092 = vadd.f32 %v1090, %v1091
  %v1093 = vrot.slane %v1092, 1
  %v1094 = vadd.f32 %v1092, %v1093
  %v1095 = vadd.f32 %v1045, %v1052
  %v1096 = vadd.f32 %v1095, %v1059
  %v1097 = vadd.f32 %v1096, %v1066
  %v1098 = vadd.f32 %v1073, %v1080
  %v1099 = vadd.f32 %v1098, %v1087
  %v1100 = vadd.f32 %v1099, %v1094
  %v1101 = vld [vmem:[#allocation2] sm:$0x1]
  %v1102 = vadd.f32 %v1097, %v1101
  %v1103 = vadd.f32 %v1100, %v1101
  %vm1104 = vcmask 0
  %1105 = vst.msk [vmem:[%s4] sm:$0x1] %vm1104, %v1102
  %1106 = vst.msk [vmem:[%s4 + $0x1] sm:$0x1] %vm1104, %v1103
  // Predicated region
  $region18: #{cnn2datt_forward.1} parent=0 // pred_check
    _
  $region19: #{cnn2datt_forward.1} parent=0 // pred_check_branch
    %1108 = sbr.rel (0) target = $region21
  $region20: #{cnn2datt_forward.1} parent=0 // pred_region
    _
  $region21: #{cnn2datt_forward.1} parent=0 // pred_fallthru
    _
  // Predicated region
  $region22: #{cnn2datt_forward.1} parent=0 // pred_check
    _
  $region23: #{cnn2datt_forward.1} parent=0 // pred_check_branch
    %1110 = sbr.rel (0) target = $region25
  $region24: #{cnn2datt_forward.1} parent=0 // pred_region
    _
  $region25: #{cnn2datt_forward.1} parent=0 // pred_fallthru
    _

</llo_original>
